<compile_context>
chip_gen: v7x
topology: tpu7x:2x2x1
jax: 0.10.0
libtpu: 0.0.40
codegen_flags: <defaults>
</compile_context>

<pallas_src>
import jax
import jax.numpy as jnp
from jax.experimental import pallas as pl
from jax.experimental.pallas import tpu as pltpu

EPS = 1e-5
MOMENTUM = 0.1


# ---------------------------------------------------------------------------
# VMEM budgets (per generation)
# ---------------------------------------------------------------------------
def _physical_vmem_bytes():
    try:
        info = pltpu.get_tpu_info()
        for name in ("vmem_capacity_bytes", "vmem_size_bytes", "vmem_bytes"):
            v = getattr(info, name, None)
            if v:
                return int(v)
    except Exception:
        pass
    return 64 * 1024 * 1024  # conservative (v7x physical VMEM)


def _vmem_budgets():
    """(tile_budget_bytes, vmem_limit_bytes) for pallas_call sites."""
    phys = _physical_vmem_bytes()
    limit = min(phys // 2, 48 * 1024 * 1024)   # 48 MiB v5e/v6e, 32 MiB v7x
    tile_budget = (limit * 3) // 4             # headroom for temps/metadata
    return tile_budget, limit


# ---------------------------------------------------------------------------
# Tile selection
# ---------------------------------------------------------------------------
def _sublane_base(itemsize):
    # native packed sublane tile: 8 rows f32, 16 rows bf16, 32 rows int8/fp8
    return max(8, 32 // max(int(itemsize), 1))


def _channel_tiles(c, itemsize):
    """Candidate channel tiles (largest first); each divides C exactly."""
    base = _sublane_base(itemsize)
    if c <= base:
        return [c]
    cands = [t for t in (256, 128, 64, 32, 16, 8)
             if base <= t <= c and t % base == 0 and c % t == 0]
    return cands if cands else [c]


def _pick_c_tile(c, itemsize):
    cands = _channel_tiles(c, itemsize)
    for t in cands:                 # prefer >= 2 channel blocks (v7x megacore)
        if c // t >= 2:
            return t
    return cands[-1]


def _pick_n_tile(n):
    for t in (8, 4, 2, 1):
        if t <= n and n % t == 0:
            return t
    return 1


def _pick_l_tile(l, row_bytes, budget):
    """Lane tile: big multiple of 128 that fits the budget (row_bytes is the
    effective bytes per lane column: buffers + f32 temps)."""
    if l <= 128:
        return l
    if (l % 128 != 0) and (row_bytes * l <= budget):
        return l                    # full extent: no tail mask needed
    best = 128
    for t in (8192, 4096, 2048, 1024, 512, 256, 128):
        if t <= l and row_bytes * t <= budget:
            best = t
            break
    return best


def _maybe_fused_ct(n, c, l, itemsize, budget):
    """Channel tile for the fused (single-pass) training kernel, or None."""
    slab_f32 = n * l * 4
    slab_in = n * l * itemsize
    fitting = [t for t in _channel_tiles(c, itemsize)
               if (4 * slab_in + 4 * slab_f32) * t <= budget]
    if not fitting:
        return None
    for t in fitting:               # prefer >= 2 parallel channel blocks
        if c // t >= 2:
            return t
    return fitting[0]


def _maybe_buffered_spec(shape, index_map, lt, n_lane_tiles):
    """x BlockSpec; request 3-deep pipelining only for small, many lane tiles."""
    buffered = getattr(pl, "Buffered", None)
    if buffered is not None and lt <= 256 and n_lane_tiles > 2:
        try:
            return pl.BlockSpec(shape, index_map, pipeline_mode=buffered(3))
        except TypeError:
            pass
    return pl.BlockSpec(shape, index_map)


# ---------------------------------------------------------------------------
# Kernels
# ---------------------------------------------------------------------------
def _make_stats_kernel(l_total, lt, mask_lanes):
    """Pass 1 (two-pass training): per-channel sum / sum-of-squares accumulated
    in the revisited (Ct, 1) output blocks across the (N, L) reduction axes."""

    def kernel(x_ref, sum_ref, sq_ref):
        ni = pl.program_id(1)
        li = pl.program_id(2)

        @pl.when(jnp.logical_and(ni == 0, li == 0))
        def _():
            sum_ref[...] = jnp.zeros_like(sum_ref)
            sq_ref[...] = jnp.zeros_like(sq_ref)

        x = x_ref[...].astype(jnp.float32)            # (nb, ct, lt)
        if mask_lanes:                                # ragged lane tail
            lane = jax.lax.broadcasted_iota(jnp.int32, x.shape, dimension=2)
            x = jnp.where(li * lt + lane < l_total, x, 0.0)
        # lane-axis (XLU) reduce per channel, then fold the batch axis
        # TODO(synk): on v7x this reduce could go to the idle MXU via a ones-matmul.
        sum_ref[...] += jnp.sum(jnp.sum(x, axis=2, keepdims=True), axis=0)
        sq_ref[...] += jnp.sum(jnp.sum(x * x, axis=2, keepdims=True), axis=0)

    return kernel


def _apply_kernel(x_ref, scale_ref, shift_ref, out_ref):
    """Pass 2 / eval: out = x * scale - shift. scale/shift are precomputed
    (Ct, 1) f32 inputs, so there is no branch, no scratch and no cross-tile
    dependency — every grid axis is 'parallel'."""
    x = x_ref[...].astype(jnp.float32)
    scale = scale_ref[...]
    shift = shift_ref[...]
    out_ref[...] = (x * scale[None, :, :] - shift[None, :, :]).astype(out_ref.dtype)


def _make_fused_train_kernel(inv_count, eps):
    """Fused training path: the whole (N, Ct, L) channel slab is resident in
    VMEM, so x is read from HBM once and written once (2x traffic)."""

    def kernel(x_ref, gain_ref, bias_ref, out_ref, mean_ref, var_ref):
        x = x_ref[...].astype(jnp.float32)            # (N, ct, L) resident slab
        s = jnp.sum(jnp.sum(x, axis=2, keepdims=True), axis=0)      # (ct, 1)
        sq = jnp.sum(jnp.sum(x * x, axis=2, keepdims=True), axis=0)
        m = s * inv_count
        v = jnp.maximum(sq * inv_count - m * m, 0.0)  # guard cancellation
        scale = jax.lax.rsqrt(v + eps) * gain_ref[...]
        shift = m * scale - bias_ref[...]
        out_ref[...] = (x * scale[None, :, :] - shift[None, :, :]).astype(out_ref.dtype)
        mean_ref[...] = m
        var_ref[...] = v

    return kernel


# ---------------------------------------------------------------------------
# pallas_call wrappers
# ---------------------------------------------------------------------------
def _compute_batch_stats(x3d, lane_tile=None):
    n, c, l = x3d.shape
    itemsize = x3d.dtype.itemsize
    budget, limit = _vmem_budgets()
    ct = _pick_c_tile(c, itemsize)
    nb = _pick_n_tile(n)
    # stats pass: only the input is double-buffered (outputs are (C,1) tiny),
    # so its lane tile can be larger than the apply pass's.
    row_bytes = nb * ct * (2 * itemsize + 2 * 4)
    lt = lane_tile if lane_tile is not None else _pick_l_tile(l, row_bytes, budget)
    n_l = pl.cdiv(l, lt)
    mask_lanes = (l % lt) != 0
    grid = (c // ct, n // nb, n_l)

    x_spec = _maybe_buffered_spec((nb, ct, lt), lambda ci, ni, li: (ni, ci, li), lt, n_l)
    p_spec = pl.BlockSpec((ct, 1), lambda ci, ni, li: (ci, 0))

    s, sq = pl.pallas_call(
        _make_stats_kernel(l, lt, mask_lanes),
        out_shape=(jax.ShapeDtypeStruct((c, 1), jnp.float32),
                   jax.ShapeDtypeStruct((c, 1), jnp.float32)),
        grid=grid,
        in_specs=[x_spec],
        out_specs=(p_spec, p_spec),
        compiler_params=pltpu.CompilerParams(
            dimension_semantics=("parallel", "arbitrary", "arbitrary"),
            vmem_limit_bytes=limit),
    )(x3d)
    return s, sq


def _apply_bn(x3d, scale_c1, shift_c1, lane_tile=None):
    n, c, l = x3d.shape
    itemsize = x3d.dtype.itemsize
    budget, limit = _vmem_budgets()
    ct = _pick_c_tile(c, itemsize)
    nb = _pick_n_tile(n)
    # apply pass: input AND output are double-buffered.
    row_bytes = nb * ct * (4 * itemsize + 2 * 4)
    lt = lane_tile if lane_tile is not None else _pick_l_tile(l, row_bytes, budget)
    n_l = pl.cdiv(l, lt)
    grid = (c // ct, n // nb, n_l)

    x_spec = _maybe_buffered_spec((nb, ct, lt), lambda ci, ni, li: (ni, ci, li), lt, n_l)
    out_spec = pl.BlockSpec((nb, ct, lt), lambda ci, ni, li: (ni, ci, li))
    p_spec = pl.BlockSpec((ct, 1), lambda ci, ni, li: (ci, 0))

    return pl.pallas_call(
        _apply_kernel,
        out_shape=jax.ShapeDtypeStruct((n, c, l), x3d.dtype),
        grid=grid,
        in_specs=[x_spec, p_spec, p_spec],
        out_specs=out_spec,
        compiler_params=pltpu.CompilerParams(
            dimension_semantics=("parallel", "parallel", "parallel"),
            vmem_limit_bytes=limit),
    )(x3d, scale_c1, shift_c1)


def _fused_train(x3d, gain_c1, bias_c1, ct, eps):
    n, c, l = x3d.shape
    _, limit = _vmem_budgets()
    grid = (c // ct,)
    x_spec = pl.BlockSpec((n, ct, l), lambda ci: (0, ci, 0))
    p_spec = pl.BlockSpec((ct, 1), lambda ci: (ci, 0))

    return pl.pallas_call(
        _make_fused_train_kernel(1.0 / float(n * l), eps),
        out_shape=(jax.ShapeDtypeStruct((n, c, l), x3d.dtype),
                   jax.ShapeDtypeStruct((c, 1), jnp.float32),
                   jax.ShapeDtypeStruct((c, 1), jnp.float32)),
        grid=grid,
        in_specs=[x_spec, p_spec, p_spec],
        out_specs=(x_spec, p_spec, p_spec),
        compiler_params=pltpu.CompilerParams(
            dimension_semantics=("parallel",),
            vmem_limit_bytes=limit),
    )(x3d, gain_c1, bias_c1)


# ---------------------------------------------------------------------------
# Module-level forwards (glue: free reshapes + O(C) scale/shift + stat update)
# ---------------------------------------------------------------------------
def bn_forward_train(x, gain, bias, stored_mean, stored_var,
                     accumulation_counter=None, momentum=MOMENTUM, eps=EPS,
                     accumulate_standing=False,
                     force_two_pass=False, lane_tile=None):
    """x: (N,C,H,W); gain/bias: (1,C,1,1); stored_*: (C,). Returns
    (out, new_mean, new_var, new_counter) — buffer updates returned as new
    arrays (no in-place mutation in JAX)."""
    n, c, h, w = x.shape
    l = h * w
    x3d = x.reshape(n, c, l)                           # free reshape, no transpose
    g = gain.reshape(c, 1).astype(jnp.float32)
    b = bias.reshape(c, 1).astype(jnp.float32)
    itemsize = x.dtype.itemsize
    budget, _ = _vmem_budgets()

    fused_ct = None if force_two_pass else _maybe_fused_ct(n, c, l, itemsize, budget)
    if fused_ct is not None:
        out3d, mean_c1, var_c1 = _fused_train(x3d, g, b, fused_ct, eps)
        mean = mean_c1.reshape(c)
        var = var_c1.reshape(c)
    else:
        s, sq = _compute_batch_stats(x3d, lane_tile=lane_tile)
        inv = 1.0 / float(n * l)
        mean = (s * inv).reshape(c)
        var = jnp.maximum((sq * inv).reshape(c) - mean * mean, 0.0)
        scale = jax.lax.rsqrt(var + eps) * g.reshape(c)        # O(C) glue
        shift = mean * scale - b.reshape(c)
        out3d = _apply_bn(x3d, scale.reshape(c, 1), shift.reshape(c, 1),
                          lane_tile=lane_tile)
    out = out3d.reshape(n, c, h, w)

    if accumulation_counter is None:
        accumulation_counter = jnp.zeros((1,), jnp.float32)
    if accumulate_standing:
        new_mean = stored_mean + mean
        new_var = stored_var + var
        new_counter = accumulation_counter + 1.0
    else:
        new_mean = stored_mean * (1.0 - momentum) + mean * momentum
        new_var = stored_var * (1.0 - momentum) + var * momentum
        new_counter = accumulation_counter
    return out, new_mean, new_var, new_counter


def bn_forward_eval(x, gain, bias, stored_mean, stored_var,
                    accumulation_counter=None, eps=EPS,
                    accumulate_standing=False, lane_tile=None):
    n, c, h, w = x.shape
    x3d = x.reshape(n, c, h * w)
    mean = stored_mean.astype(jnp.float32)
    var = stored_var.astype(jnp.float32)
    if accumulate_standing:
        mean = mean / accumulation_counter
        var = var / accumulation_counter
    g = gain.reshape(c).astype(jnp.float32)
    b = bias.reshape(c).astype(jnp.float32)
    scale = jax.lax.rsqrt(var + eps) * g                       # O(C) glue
    shift = mean * scale - b
    out3d = _apply_bn(x3d, scale.reshape(c, 1), shift.reshape(c, 1),
                      lane_tile=lane_tile)
    return out3d.reshape(n, c, h, w)


# ---------------------------------------------------------------------------
# Pure-JAX reference (mirrors manual_bn / fused_bn) for validation
# ---------------------------------------------------------------------------
def _ref_train(x, gain, bias, eps=EPS):
    xf = x.astype(jnp.float32)
    m = jnp.mean(xf, axis=(0, 2, 3), keepdims=True)
    m2 = jnp.mean(xf * xf, axis=(0, 2, 3), keepdims=True)
    var = m2 - m * m
    scale = jax.lax.rsqrt(var + eps) * gain
    shift = m * scale - bias
    return x * scale - shift, m.reshape(-1), var.reshape(-1)


if __name__ == "__main__":
    key = jax.random.PRNGKey(0)

    def run_case(n, c, h, w, force_two_pass=False, lane_tile=None):
        salt = n * 1000003 + c * 997 + h * 31 + w
        k1, k2, k3 = jax.random.split(jax.random.fold_in(key, salt), 3)
        x = jax.random.normal(k1, (n, c, h, w), dtype=jnp.float32)
        gain = 1.0 + 0.1 * jax.random.normal(k2, (1, c, 1, 1), dtype=jnp.float32)
        bias = 0.1 * jax.random.normal(k3, (1, c, 1, 1), dtype=jnp.float32)
        stored_mean = jnp.zeros((c,), jnp.float32)
        stored_var = jnp.ones((c,), jnp.float32)

        out, new_mean, new_var, _ = bn_forward_train(
            x, gain, bias, stored_mean, stored_var,
            force_two_pass=force_two_pass, lane_tile=lane_tile)
        out = jax.block_until_ready(out)
        out_eval = jax.block_until_ready(
            bn_forward_eval(x, gain, bias, new_mean, new_var, lane_tile=lane_tile))

        ref_out, ref_m, ref_v = _ref_train(x, gain, bias)
        assert jnp.allclose(out, ref_out, atol=3e-5, rtol=1e-5)
        assert jnp.allclose(new_mean,
                            stored_mean * (1 - MOMENTUM) + ref_m * MOMENTUM,
                            atol=1e-5)
        assert jnp.allclose(new_var,
                            stored_var * (1 - MOMENTUM) + ref_v * MOMENTUM,
                            atol=1e-5)

        scale = jax.lax.rsqrt(new_var.reshape(1, c, 1, 1) + EPS) * gain
        ref_eval = x * scale - (new_mean.reshape(1, c, 1, 1) * scale - bias)
        assert jnp.allclose(out_eval, ref_eval, atol=3e-5, rtol=1e-5)

    # Small spec-style shape; fused single-pass path, C<8 full-extent channel block.
    run_case(2, 4, 16, 16)
    # Larger shape; fused path with 3 parallel channel blocks.
    run_case(2, 24, 64, 64)
    # Same shape, forced two-pass path: exercises the stats-accumulator kernel
    # (reduction over batch + lane grid axes) and the fully-parallel apply kernel.
    run_case(2, 24, 64, 64, force_two_pass=True)
    # Ragged spatial dim (H*W=196 not a multiple of 128) with a forced 128-lane
    # tile: exercises the cdiv grid + iota tail mask and masked output writes.
    run_case(2, 8, 14, 14, force_two_pass=True, lane_tile=128)

    print("KERNEL_OK")
</pallas_src>

<mosaic_0001>
module attributes {stable_mosaic.version = 11 : i64} {
  func.func @kernel(%arg0: i32, %arg1: memref<2x4x256xf32, #tpu.memory_space<vmem>>, %arg2: memref<4x1xf32, #tpu.memory_space<vmem>>, %arg3: memref<4x1xf32, #tpu.memory_space<vmem>>, %arg4: memref<2x4x256xf32, #tpu.memory_space<vmem>>, %arg5: memref<4x1xf32, #tpu.memory_space<vmem>>, %arg6: memref<4x1xf32, #tpu.memory_space<vmem>>) attributes {dimension_semantics = [#tpu.dimension_semantics<parallel>], iteration_bounds = array<i64: 1>, scalar_prefetch = 0 : i64, scratch_operands = 0 : i64, tpu.core_type = #tpu.core_type<tc>, window_params = [{transform_indices = @transform_0, window_bounds = array<i64: 2, 4, 256>}, {transform_indices = @transform_1, window_bounds = array<i64: 4, 1>}, {transform_indices = @transform_2, window_bounds = array<i64: 4, 1>}, {transform_indices = @transform_3, window_bounds = array<i64: 2, 4, 256>}, {transform_indices = @transform_4, window_bounds = array<i64: 4, 1>}, {transform_indices = @transform_5, window_bounds = array<i64: 4, 1>}]} {
    %c0 = arith.constant 0 : index
    %c0_0 = arith.constant 0 : index
    %c0_1 = arith.constant 0 : index
    %0 = vector.load %arg1[%c0, %c0_0, %c0_1] : memref<2x4x256xf32, #tpu.memory_space<vmem>>, vector<2x4x256xf32>
    %cst = arith.constant dense<0.000000e+00> : vector<2x4xf32>
    %1 = vector.multi_reduction <add>, %0, %cst [2] : vector<2x4x256xf32> to vector<2x4xf32>
    %2 = vector.shape_cast %1 : vector<2x4xf32> to vector<2x4x1xf32>
    %cst_2 = arith.constant dense<0.000000e+00> : vector<4x1xf32>
    %3 = vector.multi_reduction <add>, %2, %cst_2 [0] : vector<2x4x1xf32> to vector<4x1xf32>
    %4 = arith.mulf %0, %0 : vector<2x4x256xf32>
    %cst_3 = arith.constant dense<0.000000e+00> : vector<2x4xf32>
    %5 = vector.multi_reduction <add>, %4, %cst_3 [2] : vector<2x4x256xf32> to vector<2x4xf32>
    %6 = vector.shape_cast %5 : vector<2x4xf32> to vector<2x4x1xf32>
    %cst_4 = arith.constant dense<0.000000e+00> : vector<4x1xf32>
    %7 = vector.multi_reduction <add>, %6, %cst_4 [0] : vector<2x4x1xf32> to vector<4x1xf32>
    %cst_5 = arith.constant 0.001953125 : f32
    %8 = vector.broadcast %cst_5 : f32 to vector<4x1xf32>
    %9 = arith.mulf %3, %8 : vector<4x1xf32>
    %cst_6 = arith.constant 0.001953125 : f32
    %10 = vector.broadcast %cst_6 : f32 to vector<4x1xf32>
    %11 = arith.mulf %7, %10 : vector<4x1xf32>
    %12 = arith.mulf %9, %9 : vector<4x1xf32>
    %13 = arith.subf %11, %12 : vector<4x1xf32>
    %cst_7 = arith.constant 0.000000e+00 : f32
    %14 = vector.broadcast %cst_7 : f32 to vector<4x1xf32>
    %15 = arith.maximumf %13, %14 : vector<4x1xf32>
    %cst_8 = arith.constant 9.99999974E-6 : f32
    %16 = vector.broadcast %cst_8 : f32 to vector<4x1xf32>
    %17 = arith.addf %15, %16 : vector<4x1xf32>
    %18 = math.rsqrt %17 : vector<4x1xf32>
    %c0_9 = arith.constant 0 : index
    %c0_10 = arith.constant 0 : index
    %19 = vector.load %arg2[%c0_9, %c0_10] : memref<4x1xf32, #tpu.memory_space<vmem>>, vector<4x1xf32>
    %20 = arith.mulf %18, %19 : vector<4x1xf32>
    %21 = arith.mulf %9, %20 : vector<4x1xf32>
    %c0_11 = arith.constant 0 : index
    %c0_12 = arith.constant 0 : index
    %22 = vector.load %arg3[%c0_11, %c0_12] : memref<4x1xf32, #tpu.memory_space<vmem>>, vector<4x1xf32>
    %23 = arith.subf %21, %22 : vector<4x1xf32>
    %24 = vector.shape_cast %20 : vector<4x1xf32> to vector<1x4x1xf32>
    %25 = vector.broadcast %24 : vector<1x4x1xf32> to vector<2x4x256xf32>
    %26 = arith.mulf %0, %25 : vector<2x4x256xf32>
    %27 = vector.shape_cast %23 : vector<4x1xf32> to vector<1x4x1xf32>
    %28 = vector.broadcast %27 : vector<1x4x1xf32> to vector<2x4x256xf32>
    %29 = arith.subf %26, %28 : vector<2x4x256xf32>
    %c0_13 = arith.constant 0 : index
    %c0_14 = arith.constant 0 : index
    %c0_15 = arith.constant 0 : index
    %30 = vector.load %arg4[%c0_13, %c0_14, %c0_15] : memref<2x4x256xf32, #tpu.memory_space<vmem>>, vector<2x4x256xf32>
    tpu.vector_store %arg4[%c0_13, %c0_14, %c0_15], %29 {strides = array<i32>} : memref<2x4x256xf32, #tpu.memory_space<vmem>>, vector<2x4x256xf32>,
    %c0_16 = arith.constant 0 : index
    %c0_17 = arith.constant 0 : index
    %31 = vector.load %arg5[%c0_16, %c0_17] : memref<4x1xf32, #tpu.memory_space<vmem>>, vector<4x1xf32>
    tpu.vector_store %arg5[%c0_16, %c0_17], %9 {strides = array<i32>} : memref<4x1xf32, #tpu.memory_space<vmem>>, vector<4x1xf32>,
    %c0_18 = arith.constant 0 : index
    %c0_19 = arith.constant 0 : index
    %32 = vector.load %arg6[%c0_18, %c0_19] : memref<4x1xf32, #tpu.memory_space<vmem>>, vector<4x1xf32>
    tpu.vector_store %arg6[%c0_18, %c0_19], %15 {strides = array<i32>} : memref<4x1xf32, #tpu.memory_space<vmem>>, vector<4x1xf32>,
    return
  }
  func.func @transform_0(%arg0: i32) -> (i32, i32, i32) {
    %c0_i32 = arith.constant 0 : i32
    %c0_i32_0 = arith.constant 0 : i32
    %c0_i32_1 = arith.constant 0 : i32
    return %c0_i32, %arg0, %c0_i32_0 : i32, i32, i32
  }
  func.func @transform_1(%arg0: i32) -> (i32, i32) {
    %c0_i32 = arith.constant 0 : i32
    %c0_i32_0 = arith.constant 0 : i32
    return %arg0, %c0_i32 : i32, i32
  }
  func.func @transform_2(%arg0: i32) -> (i32, i32) {
    %c0_i32 = arith.constant 0 : i32
    %c0_i32_0 = arith.constant 0 : i32
    return %arg0, %c0_i32 : i32, i32
  }
  func.func @transform_3(%arg0: i32) -> (i32, i32, i32) {
    %c0_i32 = arith.constant 0 : i32
    %c0_i32_0 = arith.constant 0 : i32
    %c0_i32_1 = arith.constant 0 : i32
    return %c0_i32, %arg0, %c0_i32_0 : i32, i32, i32
  }
  func.func @transform_4(%arg0: i32) -> (i32, i32) {
    %c0_i32 = arith.constant 0 : i32
    %c0_i32_0 = arith.constant 0 : i32
    return %arg0, %c0_i32 : i32, i32
  }
  func.func @transform_5(%arg0: i32) -> (i32, i32) {
    %c0_i32 = arith.constant 0 : i32
    %c0_i32_0 = arith.constant 0 : i32
    return %arg0, %c0_i32 : i32, i32
  }
}

</mosaic_0001>

<llo_original>
// kernel: tpu_custom_call.1
$region0: #{tpu_custom_call.1}
  #allocation0 [shape = 'u32[]', space=smem, size = 0x4, offset = 0x4, fixed_abs, tag = 'smem constant byte address 0x4 - core index']
  #allocation1 [shape = 'u32[144,128]{1,0:T(1,128)}', space=vmem, size = 0x12000, scoped, tag = 'internal scratch']
  %s0 = inlined_call_operand.hbm [shape: f32[2,4,256], index: 0, kind: input, shape index: {}]
  %s1 = inlined_call_operand.vmem [shape: f32[4,1], index: 1, kind: input, shape index: {}]
  %s2 = inlined_call_operand.vmem [shape: f32[4,1], index: 2, kind: input, shape index: {}]
  %s3 = inlined_call_operand.hbm [shape: f32[2,4,256], index: 3, kind: output, shape index: {0}]
  %s4 = inlined_call_operand.vmem [shape: f32[4,1], index: 4, kind: output, shape index: {1}]
  %s5 = inlined_call_operand.vmem [shape: f32[4,1], index: 5, kind: output, shape index: {2}]
  %6 = xla_tuple %s3, %s4, %s5
  %s7 = sld [smem:[#allocation0]]
  $region42: #{tpu_custom_call.1} parent=0
    _
  %s9 = ssub.s32 1, %s7
  %s10 = scalar_select 0, %s9, %s7
  $region1: #{tpu_custom_call.1} parent=0
    #allocation2 [shape = 'u8[8192]{0}', space=vmem, size = 0x2000, scoped, tag = 'input window, operand 0, single buffered']
    #allocation3 [shape = 's32[1]{0}', space=sflag, size = 0x4, scoped, tag = 'scoped memory for tpu_custom_call.1']
    #allocation4 [shape = 's32[1]{0}', space=sflag, size = 0x4, scoped, tag = 'scoped memory for tpu_custom_call.1']
    #allocation5 [shape = 'u8[8192]{0}', space=vmem, size = 0x2000, scoped, tag = 'output window, operand 0, single buffered']
    %11 = vsyncpa [#allocation3], 0
    %12 = vsyncpa [#allocation4], 0
    // Predicated region
    $region2: #{tpu_custom_call.1} parent=1 // pred_check
      _
    $region3: #{tpu_custom_call.1} parent=1 // pred_check_branch
      %14 = sbr.rel (0) target = $region5
    $region4: #{tpu_custom_call.1} parent=1 // pred_region
      %s16 = ssub.s32 256, 256
      %17 = vsyncadd [#allocation3], %s16
      %s18 = sshll.u32 [#allocation2], 4
      %s19 = int_to_ptr.vmem [resolvable:$true] %s18
      %24 = dma.hbm_to_vmem [thread:$0]  %s0, 256, %s19, [#allocation3], 128, 128, 8
    $region5: #{tpu_custom_call.1} parent=1 // pred_fallthru
      _
    // Predicated region
    $region6: #{tpu_custom_call.1} parent=1 // pred_check
      _
    $region7: #{tpu_custom_call.1} parent=1 // pred_check_branch
      %26 = sbr.rel (0) target = $region9
    $region8: #{tpu_custom_call.1} parent=1 // pred_region
      _
    $region9: #{tpu_custom_call.1} parent=1 // pred_fallthru
      _
    // Predicated region
    $region10: #{tpu_custom_call.1} parent=1 // pred_check
      _
    $region11: #{tpu_custom_call.1} parent=1 // pred_check_branch
      %28 = sbr.rel (0) target = $region13
    $region12: #{tpu_custom_call.1} parent=1 // pred_region
      _
    $region13: #{tpu_custom_call.1} parent=1 // pred_fallthru
      _
    // Predicated region
    $region14: #{tpu_custom_call.1} parent=1 // pred_check
      _
    $region15: #{tpu_custom_call.1} parent=1 // pred_check_branch
      %30 = sbr.rel (0) target = $region17
    $region16: #{tpu_custom_call.1} parent=1 // pred_region
      %31 = dma.done [#allocation3], 256
    $region17: #{tpu_custom_call.1} parent=1 // pred_fallthru
      _
    %v32 = vld [vmem:[#allocation2] sm:$0xff]
    %v33 = vld [vmem:[#allocation2 + $0x8] sm:$0xff]
    %v36 = vcombine.high %v32, %v32
    %v37 = vcombine.high %v33, %v33
    %vm40 = vcmask 1043456
    %v41 = vsel %vm40, %v32, 0.0
    %v42 = vsel %vm40, %v36, 0.0
    %v43 = vadd.f32 %v41, %v42
    %44 = vadd.xlane.f32.xlu0 %v43
    %v45 = vpop.xlane.xlu0 %44
    %v46 = vsel %vm40, %v33, 0.0
    %v47 = vsel %vm40, %v37, 0.0
    %v48 = vadd.f32 %v46, %v47
    %49 = vadd.xlane.f32.xlu0 %v48
    %v50 = vpop.xlane.xlu0 %49
    %v51 = vsel %vm40, %v45, 0.0
    %v52 = vsel %vm40, %v50, 0.0
    %v53 = vadd.f32 %v51, %v52
    %v54 = vmul.f32 %v32, %v32
    %v55 = vmul.f32 %v33, %v33
    %v58 = vcombine.high %v54, %v54
    %v59 = vcombine.high %v55, %v55
    %v62 = vsel %vm40, %v54, 0.0
    %v63 = vsel %vm40, %v58, 0.0
    %v64 = vadd.f32 %v62, %v63
    %65 = vadd.xlane.f32.xlu0 %v64
    %v66 = vpop.xlane.xlu0 %65
    %v67 = vsel %vm40, %v55, 0.0
    %v68 = vsel %vm40, %v59, 0.0
    %v69 = vadd.f32 %v67, %v68
    %70 = vadd.xlane.f32.xlu0 %v69
    %v71 = vpop.xlane.xlu0 %70
    %v72 = vsel %vm40, %v66, 0.0
    %v73 = vsel %vm40, %v71, 0.0
    %v74 = vadd.f32 %v72, %v73
    %v75 = vmul.f32 %v53, 0.001953125
    %v76 = vmul.f32 %v74, 0.001953125
    %v77 = vmul.f32 %v75, %v75
    %v78 = vsub.f32 %v76, %v77
    %v79 = vmax.f32 %v78, 0.0
    %v80 = vadd.f32 %v79, 1e-05
    %v81 = vrsqrt.pop %v80
    %v82 = vld [vmem:[%s1] sm:$0xf]
    %v83 = vmul.f32 %v81, %v82
    %v84 = vmul.f32 %v75, %v83
    %v85 = vld [vmem:[%s2] sm:$0xf]
    %v86 = vsub.f32 %v84, %v85
    %88 = vset.pattern.permute.xlu0 0
    %89 = vperm.xlu0 %88, %v83
    %v90 = vpop.permute.xlu0 %89
    %v92 = vunpack.c.l.s4 839922192
    %v93 = vunpack.c.0.s8 %v92
    %v94 = vlaneseq
    %v95 = vshrl.u32 %v94, 7
    %v96 = vsub.s32 %v93, %v95
    %v97 = vrot.slane %v90, %v96
    %v99 = vmul.f32 %v32, %v97
    %v100 = vmul.f32 %v33, %v97
    %102 = vset.pattern.permute.xlu0 0
    %103 = vperm.xlu0 %102, %v86
    %v104 = vpop.permute.xlu0 %103
    %v106 = vunpack.c.l.s4 839922192
    %v107 = vunpack.c.0.s8 %v106
    %v108 = vlaneseq
    %v109 = vshrl.u32 %v108, 7
    %v110 = vsub.s32 %v107, %v109
    %v111 = vrot.slane %v104, %v110
    %v113 = vsub.f32 %v99, %v111
    %v114 = vsub.f32 %v100, %v111
    %115 = vst [vmem:[#allocation5] sm:$0xff] %v113
    %116 = vst [vmem:[#allocation5 + $0x8] sm:$0xff] %v114
    %vm117 = vcmask 3072
    %118 = vst.msk [vmem:[%s4] sm:$0xf] %vm117, %v75
    %119 = vst.msk [vmem:[%s5] sm:$0xf] %vm117, %v79
    // Predicated region
    $region18: #{tpu_custom_call.1} parent=1 // pred_check
      _
    $region19: #{tpu_custom_call.1} parent=1 // pred_check_branch
      %121 = sbr.rel (0) target = $region21
    $region20: #{tpu_custom_call.1} parent=1 // pred_region
      %s123 = ssub.s32 256, 256
      %124 = vsyncadd [#allocation4], %s123
      %s125 = sshll.u32 [#allocation5], 4
      %s126 = int_to_ptr.vmem [resolvable:$true] %s125
      %131 = dma.vmem_to_hbm [thread:$0]  %s126, 256, %s3, [#allocation4], 128, 128, 8
    $region21: #{tpu_custom_call.1} parent=1 // pred_fallthru
      _
    // Predicated region
    $region22: #{tpu_custom_call.1} parent=1 // pred_check
      _
    $region23: #{tpu_custom_call.1} parent=1 // pred_check_branch
      %133 = sbr.rel (0) target = $region25
    $region24: #{tpu_custom_call.1} parent=1 // pred_region
      _
    $region25: #{tpu_custom_call.1} parent=1 // pred_fallthru
      _
    // Predicated region
    $region26: #{tpu_custom_call.1} parent=1 // pred_check
      _
    $region27: #{tpu_custom_call.1} parent=1 // pred_check_branch
      %135 = sbr.rel (0) target = $region29
    $region28: #{tpu_custom_call.1} parent=1 // pred_region
      _
    $region29: #{tpu_custom_call.1} parent=1 // pred_fallthru
      _
    // Predicated region
    $region30: #{tpu_custom_call.1} parent=1 // pred_check
      _
    $region31: #{tpu_custom_call.1} parent=1 // pred_check_branch
      %137 = sbr.rel (0) target = $region33
    $region32: #{tpu_custom_call.1} parent=1 // pred_region
      %138 = dma.done [#allocation4], 256
    $region33: #{tpu_custom_call.1} parent=1 // pred_fallthru
      _
    // Predicated region
    $region34: #{tpu_custom_call.1} parent=1 // pred_check
      _
    $region35: #{tpu_custom_call.1} parent=1 // pred_check_branch
      %140 = sbr.rel (0) target = $region37
    $region36: #{tpu_custom_call.1} parent=1 // pred_region
      _
    $region37: #{tpu_custom_call.1} parent=1 // pred_fallthru
      _
    // Predicated region
    $region38: #{tpu_custom_call.1} parent=1 // pred_check
      _
    $region39: #{tpu_custom_call.1} parent=1 // pred_check_branch
      %142 = sbr.rel (0) target = $region41
    $region40: #{tpu_custom_call.1} parent=1 // pred_region
      _
    $region41: #{tpu_custom_call.1} parent=1 // pred_fallthru
      _
    %143 = vsyncpa [#allocation3], 1
    %144 = vsyncpa [#allocation4], 1

</llo_original>
